<compile_context>
chip_gen: v7x
topology: tpu7x:2x2x1
jax: 0.10.0
libtpu: 0.0.40
codegen_flags: <defaults>
</compile_context>

<pallas_src>
import jax
import jax.numpy as jnp
from jax.experimental import pallas as pl
from jax.experimental.pallas import tpu as pltpu


def _make_mlp_kernel(out_size: int):
    def mlp_kernel(xt_ref, w1_ref, b1_ref, w2_ref, b2_ref, w3t_ref, b3_ref,
                   out_ref):
        # fc1 + ReLU:  (H, in) @ (in, TB) -> (H, TB)
        h1 = jnp.dot(w1_ref[...], xt_ref[...],
                     preferred_element_type=jnp.float32)
        h1 = jnp.maximum(h1 + b1_ref[...], 0.0)
        # fc2 + ReLU:  (H, H) @ (H, TB) -> (H, TB)
        h2 = jnp.dot(w2_ref[...], h1, preferred_element_type=jnp.float32)
        h2 = jnp.maximum(h2 + b2_ref[...], 0.0)
        # fc3: 1-wide value head -> VPU multiply + sublane reduction, result is
        # already lane-dense (1, TB).  (General out_size falls back to an MXU
        # matmul contracting on the hidden axis.)
        if out_size == 1:
            v = jnp.sum(h2 * w3t_ref[...], axis=0, keepdims=True)
        else:
            v = jax.lax.dot_general(w3t_ref[...], h2,
                                    (((0,), (0,)), ((), ())),
                                    preferred_element_type=jnp.float32)
        out_ref[...] = (v + b3_ref[...]).astype(out_ref.dtype)

    return mlp_kernel


def value_network_forward(x, params, *, tb=512):
    """x: [B, input_size] float32 -> [B, output_size] float32."""
    w1, b1 = params["fc1_w"], params["fc1_b"]   # (H, in), (H,)
    w2, b2 = params["fc2_w"], params["fc2_b"]   # (H, H),  (H,)
    w3, b3 = params["fc3_w"], params["fc3_b"]   # (O, H),  (O,)

    B, in_size = x.shape
    hidden = w1.shape[0]
    out_size = w3.shape[0]

    tb = min(tb, B)
    grid = (pl.cdiv(B, tb),)

    # Present activations feature-major so the batch maps to lanes.
    xt = x.T                                    # (in, B)
    b1c = b1.reshape(hidden, 1)
    b2c = b2.reshape(hidden, 1)
    w3t = w3.T                                  # (H, O)
    b3c = b3.reshape(out_size, 1)

    def resident(shape):                        # weights: DMA'd once, VMEM-resident
        return pl.BlockSpec(shape, lambda i: tuple(0 for _ in shape))

    flops = 2 * B * (in_size * hidden + hidden * hidden + hidden * out_size)
    bytes_accessed = 4 * (x.size + w1.size + b1.size + w2.size + b2.size
                          + w3.size + b3.size + B * out_size)

    out_t = pl.pallas_call(
        _make_mlp_kernel(out_size),
        out_shape=jax.ShapeDtypeStruct((out_size, B), jnp.float32),
        grid=grid,
        in_specs=[
            pl.BlockSpec((in_size, tb), lambda i: (0, i)),     # x tile (pipelined)
            resident((hidden, in_size)), resident((hidden, 1)),
            resident((hidden, hidden)),  resident((hidden, 1)),
            resident((hidden, out_size)), resident((out_size, 1)),
        ],
        out_specs=pl.BlockSpec((out_size, tb), lambda i: (0, i)),
        compiler_params=pltpu.CompilerParams(
            dimension_semantics=("parallel",)),
        cost_estimate=pl.CostEstimate(flops=flops, transcendentals=0,
                                      bytes_accessed=bytes_accessed),
    )(xt, w1, b1c, w2, b2c, w3t, b3c)

    return out_t.T                              # (B, out_size)


def init_params(key, input_size, hidden_size, output_size):
    """PyTorch-layout params with nn.Linear's U(-1/sqrt(fan_in), 1/sqrt(fan_in))."""
    ks = jax.random.split(key, 6)

    def linear(kw, kb, fan_in, fan_out):
        bound = 1.0 / jnp.sqrt(jnp.float32(fan_in))
        w = jax.random.uniform(kw, (fan_out, fan_in), jnp.float32, -bound, bound)
        b = jax.random.uniform(kb, (fan_out,), jnp.float32, -bound, bound)
        return w, b

    w1, b1 = linear(ks[0], ks[1], input_size, hidden_size)
    w2, b2 = linear(ks[2], ks[3], hidden_size, hidden_size)
    w3, b3 = linear(ks[4], ks[5], hidden_size, output_size)
    return dict(fc1_w=w1, fc1_b=b1, fc2_w=w2, fc2_b=b2, fc3_w=w3, fc3_b=b3)


def reference_forward(x, p):
    h = jnp.maximum(x @ p["fc1_w"].T + p["fc1_b"], 0.0)
    h = jnp.maximum(h @ p["fc2_w"].T + p["fc2_b"], 0.0)
    return h @ p["fc3_w"].T + p["fc3_b"]


if __name__ == "__main__":
    key = jax.random.PRNGKey(0)
    k_params, k_x = jax.random.split(key)

    batch, input_size, hidden_size, output_size = 256, 32, 64, 1
    params = init_params(k_params, input_size, hidden_size, output_size)
    x = jax.random.normal(k_x, (batch, input_size), jnp.float32)

    # tb=128 -> 2 grid steps at this demo size; production would use tb=512-2048.
    out = value_network_forward(x, params, tb=128)
    out = jax.block_until_ready(out)

    ref = reference_forward(x, params)
    assert out.shape == (batch, output_size)
    assert jnp.allclose(out, ref, atol=1e-4, rtol=1e-5), float(
        jnp.max(jnp.abs(out - ref)))

    print("KERNEL_OK")
</pallas_src>

<mosaic_0001>
module attributes {stable_mosaic.version = 11 : i64} {
  func.func @mlp_kernel(%arg0: i32, %arg1: memref<32x128xf32, #tpu.memory_space<vmem>>, %arg2: memref<64x32xf32, #tpu.memory_space<vmem>>, %arg3: memref<64x1xf32, #tpu.memory_space<vmem>>, %arg4: memref<64x64xf32, #tpu.memory_space<vmem>>, %arg5: memref<64x1xf32, #tpu.memory_space<vmem>>, %arg6: memref<64x1xf32, #tpu.memory_space<vmem>>, %arg7: memref<1x1xf32, #tpu.memory_space<vmem>>, %arg8: memref<1x128xf32, #tpu.memory_space<vmem>>) attributes {dimension_semantics = [#tpu.dimension_semantics<parallel>], iteration_bounds = array<i64: 2>, scalar_prefetch = 0 : i64, scratch_operands = 0 : i64, tpu.core_type = #tpu.core_type<tc>, window_params = [{transform_indices = @transform_0, window_bounds = array<i64: 32, 128>}, {pipeline_mode = #tpu.pipeline_mode<synchronous>, transform_indices = @transform_1, window_bounds = array<i64: 64, 32>}, {pipeline_mode = #tpu.pipeline_mode<synchronous>, transform_indices = @transform_2, window_bounds = array<i64: 64, 1>}, {pipeline_mode = #tpu.pipeline_mode<synchronous>, transform_indices = @transform_3, window_bounds = array<i64: 64, 64>}, {pipeline_mode = #tpu.pipeline_mode<synchronous>, transform_indices = @transform_4, window_bounds = array<i64: 64, 1>}, {pipeline_mode = #tpu.pipeline_mode<synchronous>, transform_indices = @transform_5, window_bounds = array<i64: 64, 1>}, {pipeline_mode = #tpu.pipeline_mode<synchronous>, transform_indices = @transform_6, window_bounds = array<i64: 1, 1>}, {transform_indices = @transform_7, window_bounds = array<i64: 1, 128>}]} {
    %c0 = arith.constant 0 : index
    %c0_0 = arith.constant 0 : index
    %0 = vector.load %arg2[%c0, %c0_0] : memref<64x32xf32, #tpu.memory_space<vmem>>, vector<64x32xf32>
    %c0_1 = arith.constant 0 : index
    %c0_2 = arith.constant 0 : index
    %1 = vector.load %arg1[%c0_1, %c0_2] : memref<32x128xf32, #tpu.memory_space<vmem>>, vector<32x128xf32>
    %cst = arith.constant dense<0.000000e+00> : vector<64x128xf32>
    %2 = tpu.matmul %0, %1, %cst {dimension_numbers = #tpu.dot_dimension_numbers<[1], [0], [0], [1], [0, 0, 1, 1], [], []>} : vector<64x32xf32>, vector<32x128xf32>, vector<64x128xf32> -> vector<64x128xf32>
    %c0_3 = arith.constant 0 : index
    %c0_4 = arith.constant 0 : index
    %3 = vector.load %arg3[%c0_3, %c0_4] : memref<64x1xf32, #tpu.memory_space<vmem>>, vector<64x1xf32>
    %4 = vector.broadcast %3 : vector<64x1xf32> to vector<64x128xf32>
    %5 = arith.addf %2, %4 : vector<64x128xf32>
    %cst_5 = arith.constant 0.000000e+00 : f32
    %6 = vector.broadcast %cst_5 : f32 to vector<64x128xf32>
    %7 = arith.maximumf %5, %6 : vector<64x128xf32>
    %c0_6 = arith.constant 0 : index
    %c0_7 = arith.constant 0 : index
    %8 = vector.load %arg4[%c0_6, %c0_7] : memref<64x64xf32, #tpu.memory_space<vmem>>, vector<64x64xf32>
    %cst_8 = arith.constant dense<0.000000e+00> : vector<64x128xf32>
    %9 = tpu.matmul %8, %7, %cst_8 {dimension_numbers = #tpu.dot_dimension_numbers<[1], [0], [0], [1], [0, 0, 1, 1], [], []>} : vector<64x64xf32>, vector<64x128xf32>, vector<64x128xf32> -> vector<64x128xf32>
    %c0_9 = arith.constant 0 : index
    %c0_10 = arith.constant 0 : index
    %10 = vector.load %arg5[%c0_9, %c0_10] : memref<64x1xf32, #tpu.memory_space<vmem>>, vector<64x1xf32>
    %11 = vector.broadcast %10 : vector<64x1xf32> to vector<64x128xf32>
    %12 = arith.addf %9, %11 : vector<64x128xf32>
    %cst_11 = arith.constant 0.000000e+00 : f32
    %13 = vector.broadcast %cst_11 : f32 to vector<64x128xf32>
    %14 = arith.maximumf %12, %13 : vector<64x128xf32>
    %c0_12 = arith.constant 0 : index
    %c0_13 = arith.constant 0 : index
    %15 = vector.load %arg6[%c0_12, %c0_13] : memref<64x1xf32, #tpu.memory_space<vmem>>, vector<64x1xf32>
    %16 = vector.broadcast %15 : vector<64x1xf32> to vector<64x128xf32>
    %17 = arith.mulf %14, %16 : vector<64x128xf32>
    %cst_14 = arith.constant dense<0.000000e+00> : vector<128xf32>
    %18 = vector.multi_reduction <add>, %17, %cst_14 [0] : vector<64x128xf32> to vector<128xf32>
    %19 = vector.shape_cast %18 : vector<128xf32> to vector<1x128xf32>
    %c0_15 = arith.constant 0 : index
    %c0_16 = arith.constant 0 : index
    %20 = vector.load %arg7[%c0_15, %c0_16] : memref<1x1xf32, #tpu.memory_space<vmem>>, vector<1x1xf32>
    %21 = vector.broadcast %20 : vector<1x1xf32> to vector<1x128xf32>
    %22 = arith.addf %19, %21 : vector<1x128xf32>
    %c0_17 = arith.constant 0 : index
    %c0_18 = arith.constant 0 : index
    %23 = vector.load %arg8[%c0_17, %c0_18] : memref<1x128xf32, #tpu.memory_space<vmem>>, vector<1x128xf32>
    tpu.vector_store %arg8[%c0_17, %c0_18], %22 {strides = array<i32>} : memref<1x128xf32, #tpu.memory_space<vmem>>, vector<1x128xf32>,
    return
  }
  func.func @transform_0(%arg0: i32) -> (i32, i32) {
    %c0_i32 = arith.constant 0 : i32
    %c0_i32_0 = arith.constant 0 : i32
    return %c0_i32, %arg0 : i32, i32
  }
  func.func @transform_1(%arg0: i32) -> (i32, i32) {
    %c0_i32 = arith.constant 0 : i32
    %c0_i32_0 = arith.constant 0 : i32
    %c0_i32_1 = arith.constant 0 : i32
    return %c0_i32, %c0_i32_0 : i32, i32
  }
  func.func @transform_2(%arg0: i32) -> (i32, i32) {
    %c0_i32 = arith.constant 0 : i32
    %c0_i32_0 = arith.constant 0 : i32
    %c0_i32_1 = arith.constant 0 : i32
    return %c0_i32, %c0_i32_0 : i32, i32
  }
  func.func @transform_3(%arg0: i32) -> (i32, i32) {
    %c0_i32 = arith.constant 0 : i32
    %c0_i32_0 = arith.constant 0 : i32
    %c0_i32_1 = arith.constant 0 : i32
    return %c0_i32, %c0_i32_0 : i32, i32
  }
  func.func @transform_4(%arg0: i32) -> (i32, i32) {
    %c0_i32 = arith.constant 0 : i32
    %c0_i32_0 = arith.constant 0 : i32
    %c0_i32_1 = arith.constant 0 : i32
    return %c0_i32, %c0_i32_0 : i32, i32
  }
  func.func @transform_5(%arg0: i32) -> (i32, i32) {
    %c0_i32 = arith.constant 0 : i32
    %c0_i32_0 = arith.constant 0 : i32
    %c0_i32_1 = arith.constant 0 : i32
    return %c0_i32, %c0_i32_0 : i32, i32
  }
  func.func @transform_6(%arg0: i32) -> (i32, i32) {
    %c0_i32 = arith.constant 0 : i32
    %c0_i32_0 = arith.constant 0 : i32
    %c0_i32_1 = arith.constant 0 : i32
    return %c0_i32, %c0_i32_0 : i32, i32
  }
  func.func @transform_7(%arg0: i32) -> (i32, i32) {
    %c0_i32 = arith.constant 0 : i32
    %c0_i32_0 = arith.constant 0 : i32
    return %c0_i32, %arg0 : i32, i32
  }
}

</mosaic_0001>

<llo_original>
// kernel: tpu_custom_call.1
$region0: #{tpu_custom_call.1}
  #allocation0 [shape = 'u32[]', space=smem, size = 0x4, offset = 0x4, fixed_abs, tag = 'smem constant byte address 0x4 - core index']
  #allocation1 [shape = 'u32[144,128]{1,0:T(1,128)}', space=vmem, size = 0x12000, scoped, tag = 'internal scratch']
  #allocation2 [shape = 'f32[1,1]{1,0:T(1,128)S(1)}', space=vmem, size = 0x200, scoped, tag = 'scoped memory for tpu_custom_call.1']
  %s0 = inlined_call_operand.vmem [shape: f32[32,256], index: 0, kind: input, shape index: {}]
  %s1 = inlined_call_operand.vmem [shape: f32[64,32], index: 1, kind: input, shape index: {}]
  %s2 = inlined_call_operand.vmem [shape: f32[64,1], index: 2, kind: input, shape index: {}]
  %s3 = inlined_call_operand.vmem [shape: f32[64,64], index: 3, kind: input, shape index: {}]
  %s4 = inlined_call_operand.vmem [shape: f32[64,1], index: 4, kind: input, shape index: {}]
  %s5 = inlined_call_operand.vmem [shape: f32[64,1], index: 5, kind: input, shape index: {}]
  %s6 = inlined_call_operand.<no memory space> [shape: f32[1,1], index: 6, kind: input, shape index: {}]
  %s7 = inlined_call_operand.hbm [shape: f32[1,256], index: 7, kind: output, shape index: {}]
  %s8 = sld [smem:[#allocation0]]
  $region99: #{tpu_custom_call.1} parent=0
    _
  %s10 = ssub.s32 1, %s8
  %s11 = scalar_select 0, %s10, %s8
  %v12 = vstv %s6
  %13 = vst [vmem:[#allocation2] sm:$0x1] %v12
  $region1: #{tpu_custom_call.1} parent=0
    #allocation3 [shape = 'u8[32768]{0}', space=vmem, size = 0x8000, scoped, tag = 'input window, operand 0']
    #allocation4 [shape = 'u8[1024]{0}', space=vmem, size = 0x400, scoped, tag = 'output window, operand 0']
    #allocation5 [shape = 's32[2]{0}', space=sflag, size = 0x8, scoped, tag = 'scoped memory for tpu_custom_call.1']
    %14 = vsyncpa [#allocation5], 0
    %s15 = scalar_lea.sflag [#allocation5], 1
    %16 = vsyncpa %s15, 0
    loop: start=0, step=1, limit=4
    $region2: #{tpu_custom_call.1} parent=1 // loop_pre_header
      _
    $region3: #{tpu_custom_call.1} parent=1 // loop_header
      %s18 = sphi 0, %s22
      %p19 = scmp.ge.s32.totalorder %s18, 4
      %s28 = sphi 0, %s30
      %s31 = sphi 0, %s28
      %s32 = sphi 0, %s31
      %s48 = sphi 0, %s32
      %s52 = sphi 0, %s52
      %s54 = sphi 0, %s52
      %s55 = sphi 0, %s54
      %s69 = sphi 0, %s55
      %s73 = sphi 0, %s73
      %s75 = sphi 0, %s73
      %s76 = sphi 0, %s75
      %s90 = sphi 0, %s76
      %s94 = sphi 0, %s94
      %s96 = sphi 0, %s94
      %s97 = sphi 0, %s96
      %s111 = sphi 0, %s97
      %s115 = sphi 0, %s115
      %s117 = sphi 0, %s115
      %s118 = sphi 0, %s117
      %s132 = sphi 0, %s118
      %s136 = sphi 0, %s136
      %s138 = sphi 0, %s136
      %s139 = sphi 0, %s138
      %s153 = sphi 0, %s139
      %s157 = sphi 0, %s157
      %s159 = sphi 0, %s157
      %s160 = sphi 0, %s159
      %s174 = sphi 0, %s160
      %s180 = sphi 0, %s182
      %s183 = sphi 0, %s180
      %s184 = sphi 0, %s183
      %s200 = sphi 0, %s184
    $region4: #{tpu_custom_call.1} parent=1 // loop_header_branch
      %21 = sbr.rel (%p19) target = $region8
    $region5: #{tpu_custom_call.1} parent=1 // loop_body
      %s23 = ssub.s32 %s18, 1
      %s24 = ssub.s32 %s18, 2
      %s25 = sadd.s32 %s18, 1
      %s26 = ssub.s32 %s18, %s25
      %p27 = scmp.eq.s32.totalorder %s26, 0
      %s29 = sadd.s32 %s28, 1
      %s30 = scalar_select %p27, %s28, %s29
      %p33 = pneg %p27
      %p34 = scmp.eq.s32.totalorder %s18, 1
      %p35 = por %p33, %p34
      %p36 = scmp.ne.s32.totalorder %s28, %s31
      %p37 = scmp.eq.s32.totalorder %s18, 0
      %p38 = por %p36, %p37
      %p39 = scmp.ne.s32.totalorder %s28, %s31
      %p40 = scmp.eq.s32.totalorder %s23, 1
      %p41 = por %p39, %p40
      %p42 = scmp.ne.s32.totalorder %s31, %s32
      %p43 = scmp.eq.s32.totalorder %s23, 0
      %p44 = por %p42, %p43
      %p45 = scmp.ne.s32.totalorder %s31, %s32
      %p46 = scmp.eq.s32.totalorder %s24, 1
      %p47 = por %p45, %p46
      %p49 = scmp.ne.s32.totalorder %s32, %s48
      %p50 = scmp.eq.s32.totalorder %s24, 0
      %p51 = por %p49, %p50
      %s53 = sadd.s32 %s52, 1
      %p56 = scmp.eq.s32.totalorder %s18, 1
      %p57 = scmp.ne.s32.totalorder %s52, %s54
      %p58 = scmp.eq.s32.totalorder %s18, 0
      %p59 = por %p57, %p58
      %p60 = scmp.ne.s32.totalorder %s52, %s54
      %p61 = scmp.eq.s32.totalorder %s23, 1
      %p62 = por %p60, %p61
      %p63 = scmp.ne.s32.totalorder %s54, %s55
      %p64 = scmp.eq.s32.totalorder %s23, 0
      %p65 = por %p63, %p64
      %p66 = scmp.ne.s32.totalorder %s54, %s55
      %p67 = scmp.eq.s32.totalorder %s24, 1
      %p68 = por %p66, %p67
      %p70 = scmp.ne.s32.totalorder %s55, %s69
      %p71 = scmp.eq.s32.totalorder %s24, 0
      %p72 = por %p70, %p71
      %s74 = sadd.s32 %s73, 1
      %p77 = scmp.eq.s32.totalorder %s18, 1
      %p78 = scmp.ne.s32.totalorder %s73, %s75
      %p79 = scmp.eq.s32.totalorder %s18, 0
      %p80 = por %p78, %p79
      %p81 = scmp.ne.s32.totalorder %s73, %s75
      %p82 = scmp.eq.s32.totalorder %s23, 1
      %p83 = por %p81, %p82
      %p84 = scmp.ne.s32.totalorder %s75, %s76
      %p85 = scmp.eq.s32.totalorder %s23, 0
      %p86 = por %p84, %p85
      %p87 = scmp.ne.s32.totalorder %s75, %s76
      %p88 = scmp.eq.s32.totalorder %s24, 1
      %p89 = por %p87, %p88
      %p91 = scmp.ne.s32.totalorder %s76, %s90
      %p92 = scmp.eq.s32.totalorder %s24, 0
      %p93 = por %p91, %p92
      %s95 = sadd.s32 %s94, 1
      %p98 = scmp.eq.s32.totalorder %s18, 1
      %p99 = scmp.ne.s32.totalorder %s94, %s96
      %p100 = scmp.eq.s32.totalorder %s18, 0
      %p101 = por %p99, %p100
      %p102 = scmp.ne.s32.totalorder %s94, %s96
      %p103 = scmp.eq.s32.totalorder %s23, 1
      %p104 = por %p102, %p103
      %p105 = scmp.ne.s32.totalorder %s96, %s97
      %p106 = scmp.eq.s32.totalorder %s23, 0
      %p107 = por %p105, %p106
      %p108 = scmp.ne.s32.totalorder %s96, %s97
      %p109 = scmp.eq.s32.totalorder %s24, 1
      %p110 = por %p108, %p109
      %p112 = scmp.ne.s32.totalorder %s97, %s111
      %p113 = scmp.eq.s32.totalorder %s24, 0
      %p114 = por %p112, %p113
      %s116 = sadd.s32 %s115, 1
      %p119 = scmp.eq.s32.totalorder %s18, 1
      %p120 = scmp.ne.s32.totalorder %s115, %s117
      %p121 = scmp.eq.s32.totalorder %s18, 0
      %p122 = por %p120, %p121
      %p123 = scmp.ne.s32.totalorder %s115, %s117
      %p124 = scmp.eq.s32.totalorder %s23, 1
      %p125 = por %p123, %p124
      %p126 = scmp.ne.s32.totalorder %s117, %s118
      %p127 = scmp.eq.s32.totalorder %s23, 0
      %p128 = por %p126, %p127
      %p129 = scmp.ne.s32.totalorder %s117, %s118
      %p130 = scmp.eq.s32.totalorder %s24, 1
      %p131 = por %p129, %p130
      %p133 = scmp.ne.s32.totalorder %s118, %s132
      %p134 = scmp.eq.s32.totalorder %s24, 0
      %p135 = por %p133, %p134
      %s137 = sadd.s32 %s136, 1
      %p140 = scmp.eq.s32.totalorder %s18, 1
      %p141 = scmp.ne.s32.totalorder %s136, %s138
      %p142 = scmp.eq.s32.totalorder %s18, 0
      %p143 = por %p141, %p142
      %p144 = scmp.ne.s32.totalorder %s136, %s138
      %p145 = scmp.eq.s32.totalorder %s23, 1
      %p146 = por %p144, %p145
      %p147 = scmp.ne.s32.totalorder %s138, %s139
      %p148 = scmp.eq.s32.totalorder %s23, 0
      %p149 = por %p147, %p148
      %p150 = scmp.ne.s32.totalorder %s138, %s139
      %p151 = scmp.eq.s32.totalorder %s24, 1
      %p152 = por %p150, %p151
      %p154 = scmp.ne.s32.totalorder %s139, %s153
      %p155 = scmp.eq.s32.totalorder %s24, 0
      %p156 = por %p154, %p155
      %s158 = sadd.s32 %s157, 1
      %p161 = scmp.eq.s32.totalorder %s18, 1
      %p162 = scmp.ne.s32.totalorder %s157, %s159
      %p163 = scmp.eq.s32.totalorder %s18, 0
      %p164 = por %p162, %p163
      %p165 = scmp.ne.s32.totalorder %s157, %s159
      %p166 = scmp.eq.s32.totalorder %s23, 1
      %p167 = por %p165, %p166
      %p168 = scmp.ne.s32.totalorder %s159, %s160
      %p169 = scmp.eq.s32.totalorder %s23, 0
      %p170 = por %p168, %p169
      %p171 = scmp.ne.s32.totalorder %s159, %s160
      %p172 = scmp.eq.s32.totalorder %s24, 1
      %p173 = por %p171, %p172
      %p175 = scmp.ne.s32.totalorder %s160, %s174
      %p176 = scmp.eq.s32.totalorder %s24, 0
      %p177 = por %p175, %p176
      %s178 = ssub.s32 %s18, %s25
      %p179 = scmp.eq.s32.totalorder %s178, 0
      %s181 = sadd.s32 %s180, 1
      %s182 = scalar_select %p179, %s180, %s181
      %p185 = pneg %p179
      %p186 = scmp.eq.s32.totalorder %s18, 1
      %p187 = por %p185, %p186
      %p188 = scmp.ne.s32.totalorder %s180, %s183
      %p189 = scmp.eq.s32.totalorder %s18, 0
      %p190 = por %p188, %p189
      %p191 = scmp.ne.s32.totalorder %s180, %s183
      %p192 = scmp.eq.s32.totalorder %s23, 1
      %p193 = por %p191, %p192
      %p194 = scmp.ne.s32.totalorder %s183, %s184
      %p195 = scmp.eq.s32.totalorder %s23, 0
      %p196 = por %p194, %p195
      %p197 = scmp.ne.s32.totalorder %s183, %s184
      %p198 = scmp.eq.s32.totalorder %s24, 1
      %p199 = por %p197, %p198
      %p201 = scmp.ne.s32.totalorder %s184, %s200
      %p202 = scmp.eq.s32.totalorder %s24, 0
      %p203 = por %p201, %p202
      %p204 = scmp.le.s32.totalorder 1, %s18
      %p205 = scmp.lt.s32.totalorder %s18, 3
      %p206 = pnand %p204, %p205
      %p207 = pneg %p206
      // Predicated region
      $region9: #{tpu_custom_call.1} parent=5 // pred_check
        _
      $region10: #{tpu_custom_call.1} parent=5 // pred_check_branch
        %209 = sbr.rel (%p206) target = $region12
      $region11: #{tpu_custom_call.1} parent=5 // pred_region
        %s210 = ssub.s32 %s18, 1
        // Predicated region
        $region13: #{tpu_custom_call.1} parent=11 // pred_check
          %p211 = pneg %p65
        $region14: #{tpu_custom_call.1} parent=11 // pred_check_branch
          %213 = sbr.rel (%p211) target = $region16
        $region15: #{tpu_custom_call.1} parent=11 // pred_region
          _
        $region16: #{tpu_custom_call.1} parent=11 // pred_fallthru
          _
        // Predicated region
        $region17: #{tpu_custom_call.1} parent=11 // pred_check
          %p214 = pneg %p86
        $region18: #{tpu_custom_call.1} parent=11 // pred_check_branch
          %216 = sbr.rel (%p214) target = $region20
        $region19: #{tpu_custom_call.1} parent=11 // pred_region
          _
        $region20: #{tpu_custom_call.1} parent=11 // pred_fallthru
          _
        // Predicated region
        $region21: #{tpu_custom_call.1} parent=11 // pred_check
          %p217 = pneg %p107
        $region22: #{tpu_custom_call.1} parent=11 // pred_check_branch
          %219 = sbr.rel (%p217) target = $region24
        $region23: #{tpu_custom_call.1} parent=11 // pred_region
          _
        $region24: #{tpu_custom_call.1} parent=11 // pred_fallthru
          _
        // Predicated region
        $region25: #{tpu_custom_call.1} parent=11 // pred_check
          %p220 = pneg %p128
        $region26: #{tpu_custom_call.1} parent=11 // pred_check_branch
          %222 = sbr.rel (%p220) target = $region28
        $region27: #{tpu_custom_call.1} parent=11 // pred_region
          _
        $region28: #{tpu_custom_call.1} parent=11 // pred_fallthru
          _
        // Predicated region
        $region29: #{tpu_custom_call.1} parent=11 // pred_check
          %p223 = pneg %p149
        $region30: #{tpu_custom_call.1} parent=11 // pred_check_branch
          %225 = sbr.rel (%p223) target = $region32
        $region31: #{tpu_custom_call.1} parent=11 // pred_region
          _
        $region32: #{tpu_custom_call.1} parent=11 // pred_fallthru
          _
        // Predicated region
        $region33: #{tpu_custom_call.1} parent=11 // pred_check
          %p226 = pneg %p170
        $region34: #{tpu_custom_call.1} parent=11 // pred_check_branch
          %228 = sbr.rel (%p226) target = $region36
        $region35: #{tpu_custom_call.1} parent=11 // pred_region
          _
        $region36: #{tpu_custom_call.1} parent=11 // pred_fallthru
          _
      $region12: #{tpu_custom_call.1} parent=5 // pred_fallthru
        _
      %p229 = scmp.lt.s32.totalorder %s18, 2
      // Predicated region
      $region37: #{tpu_custom_call.1} parent=5 // pred_check
        %p230 = pneg %p229
      $region38: #{tpu_custom_call.1} parent=5 // pred_check_branch
        %232 = sbr.rel (%p230) target = $region40
      $region39: #{tpu_custom_call.1} parent=5 // pred_region
        // Predicated region
        $region41: #{tpu_custom_call.1} parent=39 // pred_check
          %p233 = pneg %p38
        $region42: #{tpu_custom_call.1} parent=39 // pred_check_branch
          %235 = sbr.rel (%p233) target = $region44
        $region43: #{tpu_custom_call.1} parent=39 // pred_region
          %s236 = sand.u32 %s28, 1
          %s237 = sand.u32 %s28, 1
          %s238 = smul.addr %s237, 32
          %s239 = scalar_lea.vmem [#allocation3], %s238
          %s240 = smul.addr %s18, 8
          %s241 = scalar_lea.vmem %s0, %s240
          // Predicated region
          $region45: #{tpu_custom_call.1} parent=43 // pred_check
            _
          $region46: #{tpu_custom_call.1} parent=43 // pred_check_branch
            %243 = sbr.rel (0) target = $region48
          $region47: #{tpu_custom_call.1} parent=43 // pred_region
            // Predicated region
            $region49: #{tpu_custom_call.1} parent=47 // pred_check
              _
            $region50: #{tpu_custom_call.1} parent=47 // pred_check_branch
              %245 = sbr.rel (0) target = $region52
            $region51: #{tpu_custom_call.1} parent=47 // pred_region
              // Predicated region
              $region64: #{tpu_custom_call.1} parent=51 // pred_check
                _
              $region65: #{tpu_custom_call.1} parent=51 // pred_check_branch
                %266 = sbr.rel (0) target = $region67
              $region66: #{tpu_custom_call.1} parent=51 // pred_region
                loop: start=0, step=1, limit=1
                $region68: #{tpu_custom_call.1} parent=66 // loop_pre_header
                  _
                $region69: #{tpu_custom_call.1} parent=66 // loop_header
                  %s268 = sphi 0, %s272
                  %p269 = scmp.ge.s32.totalorder %s268, 1
                  %s273 = sphi %s241, %s241
                  %s274 = sphi %s239, %s239
                $region70: #{tpu_custom_call.1} parent=66 // loop_header_branch
                  %271 = sbr.rel (%p269) target = $region74
                $region71: #{tpu_custom_call.1} parent=66 // loop_body
                  %v275 = vld [vmem:[%s273] sm:$0xff]
                  %276 = vst [vmem:[%s274] sm:$0xff] %v275
                  %v277 = vld [vmem:[%s273 + $0x10] sm:$0xff]
                  %278 = vst [vmem:[%s274 + $0x8] sm:$0xff] %v277
                  %v279 = vld [vmem:[%s273 + $0x20] sm:$0xff]
                  %280 = vst [vmem:[%s274 + $0x10] sm:$0xff] %v279
                  %v281 = vld [vmem:[%s273 + $0x30] sm:$0xff]
                  %282 = vst [vmem:[%s274 + $0x18] sm:$0xff] %v281
                $region72: #{tpu_custom_call.1} parent=66 // loop_footer
                  %s272 = sadd.s32 1, %s268
                $region73: #{tpu_custom_call.1} parent=66 // loop_footer_branch
                  %267 = sbr.rel target = $region69
                $region74: #{tpu_custom_call.1} parent=66 // loop_exit
                  _
              $region67: #{tpu_custom_call.1} parent=51 // pred_fallthru
                _
              // Predicated region
              $region75: #{tpu_custom_call.1} parent=51 // pred_check
                _
              $region76: #{tpu_custom_call.1} parent=51 // pred_check_branch
                %284 = sbr.rel target = $region78
              $region77: #{tpu_custom_call.1} parent=51 // pred_region
                _
              $region78: #{tpu_custom_call.1} parent=51 // pred_fallthru
                _
            $region52: #{tpu_custom_call.1} parent=47 // pred_fallthru
              _
            // Predicated region
            $region53: #{tpu_custom_call.1} parent=47 // pred_check
              _
            $region54: #{tpu_custom_call.1} parent=47 // pred_check_branch
              %247 = sbr.rel target = $region56
            $region55: #{tpu_custom_call.1} parent=47 // pred_region
              loop: start=0, step=1, limit=1
              $region57: #{tpu_custom_call.1} parent=55 // loop_pre_header
                _
              $region58: #{tpu_custom_call.1} parent=55 // loop_header
                %s250 = sphi 0, %s254
                %p251 = scmp.ge.s32.totalorder %s250, 1
                %s255 = sphi %s241, %s241
                %s256 = sphi %s239, %s239
              $region59: #{tpu_custom_call.1} parent=55 // loop_header_branch
                %253 = sbr.rel (%p251) target = $region63
              $region60: #{tpu_custom_call.1} parent=55 // loop_body
                %v257 = vld [vmem:[%s255] sm:$0xff]
                %258 = vst [vmem:[%s256] sm:$0xff] %v257
                %v259 = vld [vmem:[%s255 + $0x10] sm:$0xff]
                %260 = vst [vmem:[%s256 + $0x8] sm:$0xff] %v259
                %v261 = vld [vmem:[%s255 + $0x20] sm:$0xff]
                %262 = vst [vmem:[%s256 + $0x10] sm:$0xff] %v261
                %v263 = vld [vmem:[%s255 + $0x30] sm:$0xff]
                %264 = vst [vmem:[%s256 + $0x18] sm:$0xff] %v263
              $region61: #{tpu_custom_call.1} parent=55 // loop_footer
                %s254 = sadd.s32 1, %s250
              $region62: #{tpu_custom_call.1} parent=55 // loop_footer_branch
                %249 = sbr.rel target = $region58
              $region63: #{tpu_custom_call.1} parent=55 // loop_exit
                _
            $region56: #{tpu_custom_call.1} parent=47 // pred_fallthru
              _
          $region48: #{tpu_custom_call.1} parent=43 // pred_fallthru
            _
          %285 = vnop
        $region44: #{tpu_custom_call.1} parent=39 // pred_fallthru
          _
      $region40: #{tpu_custom_call.1} parent=5 // pred_fallthru
        _
      %p286 = scmp.le.s32.totalorder 1, %s18
      %p287 = scmp.lt.s32.totalorder %s18, 3
      %p288 = pnand %p286, %p287
      %p289 = pneg %p288
      // Predicated region
      $region79: #{tpu_custom_call.1} parent=5 // pred_check
        _
      $region80: #{tpu_custom_call.1} parent=5 // pred_check_branch
        %291 = sbr.rel (%p288) target = $region82
      $region81: #{tpu_custom_call.1} parent=5 // pred_region
        %s292 = ssub.s32 %s18, 1
        %s293 = sand.u32 %s31, 1
        %s294 = sand.u32 %s31, 1
        %s295 = smul.addr %s294, 32
        %s296 = scalar_lea.vmem [#allocation3], %s295
        // Predicated region
        $region83: #{tpu_custom_call.1} parent=81 // pred_check
          %p297 = pneg %p44
        $region84: #{tpu_custom_call.1} parent=81 // pred_check_branch
          %299 = sbr.rel (%p297) target = $region86
        $region85: #{tpu_custom_call.1} parent=81 // pred_region
          _
        $region86: #{tpu_custom_call.1} parent=81 // pred_fallthru
          _
        %s300 = sand.u32 %s31, 1
        %s301 = sand.u32 %s31, 1
        %s302 = smul.addr %s301, 32
        %s303 = scalar_lea.vmem [#allocation3], %s302
        %p304 = pneg %p44
        %p305 = pneg %p41
        %p306 = pneg %p65
        %p307 = pneg %p62
        %p308 = pneg %p86
        %p309 = pneg %p83
        %p310 = pneg %p107
        %p311 = pneg %p104
        %p312 = pneg %p128
        %p313 = pneg %p125
        %p314 = pneg %p149
        %p315 = pneg %p146
        %p316 = pneg %p170
        %p317 = pneg %p167
        %p318 = pneg %p196
        %p319 = pneg %p193
        %s320 = sand.u32 %s183, 1
        %s321 = scalar_lea.sflag [#allocation5], %s320
        %s322 = sand.u32 %s183, 1
        %s323 = scalar_lea.vmem [#allocation4], %s322
        %v324 = vld [vmem:[%s1] sm:$0xff]
        %v325 = vld [vmem:[%s1 + $0x8] sm:$0xff]
        %v326 = vld [vmem:[%s1 + $0x10] sm:$0xff]
        %v327 = vld [vmem:[%s1 + $0x18] sm:$0xff]
        %v328 = vld [vmem:[%s1 + $0x20] sm:$0xff]
        %v329 = vld [vmem:[%s1 + $0x28] sm:$0xff]
        %v330 = vld [vmem:[%s1 + $0x30] sm:$0xff]
        %v331 = vld [vmem:[%s1 + $0x38] sm:$0xff]
        %v332 = vld [vmem:[%s296] sm:$0xff]
        %v333 = vld [vmem:[%s296 + $0x8] sm:$0xff]
        %v334 = vld [vmem:[%s296 + $0x10] sm:$0xff]
        %v335 = vld [vmem:[%s296 + $0x18] sm:$0xff]
        %v336 = vld [vmem:[%s2] sm:$0xff]
        %v337 = vld [vmem:[%s2 + $0x8] sm:$0xff]
        %v338 = vld [vmem:[%s2 + $0x10] sm:$0xff]
        %v339 = vld [vmem:[%s2 + $0x18] sm:$0xff]
        %v340 = vld [vmem:[%s2 + $0x20] sm:$0xff]
        %v341 = vld [vmem:[%s2 + $0x28] sm:$0xff]
        %v342 = vld [vmem:[%s2 + $0x30] sm:$0xff]
        %v343 = vld [vmem:[%s2 + $0x38] sm:$0xff]
        %345 = vset.pattern.permute.xlu0 0
        %346 = vperm.xlu0 %345, %v336
        %v347 = vpop.permute.xlu0 %346
        %350 = vset.pattern.permute.xlu0 0
        %351 = vperm.xlu0 %350, %v337
        %v352 = vpop.permute.xlu0 %351
        %355 = vset.pattern.permute.xlu0 0
        %356 = vperm.xlu0 %355, %v338
        %v357 = vpop.permute.xlu0 %356
        %360 = vset.pattern.permute.xlu0 0
        %361 = vperm.xlu0 %360, %v339
        %v362 = vpop.permute.xlu0 %361
        %365 = vset.pattern.permute.xlu0 0
        %366 = vperm.xlu0 %365, %v340
        %v367 = vpop.permute.xlu0 %366
        %370 = vset.pattern.permute.xlu0 0
        %371 = vperm.xlu0 %370, %v341
        %v372 = vpop.permute.xlu0 %371
        %375 = vset.pattern.permute.xlu0 0
        %376 = vperm.xlu0 %375, %v342
        %v377 = vpop.permute.xlu0 %376
        %380 = vset.pattern.permute.xlu0 0
        %381 = vperm.xlu0 %380, %v343
        %v382 = vpop.permute.xlu0 %381
        %vm384 = vcmask 261120
        %v386 = vsel %vm384, %v324, 0
        %v389 = vsel %vm384, %v325, 0
        %v392 = vsel %vm384, %v326, 0
        %v395 = vsel %vm384, %v327, 0
        %v398 = vsel %vm384, %v328, 0
        %v401 = vsel %vm384, %v329, 0
        %v404 = vsel %vm384, %v330, 0
        %v407 = vsel %vm384, %v331, 0
        %409 = vmatprep.subr.mxu0 0.0
        %410 = vmatpush1.msra.mxu0 %v332
        %411 = vmatprep.subr.mxu0 0.0
        %412 = vmatpush1.msra.mxu0 %v333
        %413 = vmatprep.subr.mxu0 0.0
        %414 = vmatpush1.msra.mxu0 %v334
        %415 = vmatprep.subr.mxu0 0.0
        %416 = vmatpush1.msra.mxu0 %v335
        %417 = vmatprep.subr.mxu0 0.0
        %418 = vmatpush1.msra.mxu0 0.0
        %419 = vmatprep.subr.mxu0 0.0
        %420 = vmatpush1.msra.mxu0 0.0
        %421 = vmatprep.subr.mxu0 0.0
        %422 = vmatpush1.msra.mxu0 0.0
        %423 = vmatprep.subr.mxu0 0.0
        %424 = vmatpush1.msra.mxu0 0.0
        %425 = vmatprep.subr.mxu0 0.0
        %426 = vmatpush1.msra.mxu0 0.0
        %427 = vmatprep.subr.mxu0 0.0
        %428 = vmatpush1.msra.mxu0 0.0
        %429 = vmatprep.subr.mxu0 0.0
        %430 = vmatpush1.msra.mxu0 0.0
        %431 = vmatprep.subr.mxu0 0.0
        %432 = vmatpush1.msra.mxu0 0.0
        %433 = vmatprep.subr.mxu0 0.0
        %434 = vmatpush1.msra.mxu0 0.0
        %435 = vmatprep.subr.mxu0 0.0
        %436 = vmatpush1.msra.mxu0 0.0
        %437 = vmatprep.subr.mxu0 0.0
        %438 = vmatpush1.msra.mxu0 0.0
        %439 = vmatprep.subr.mxu0 0.0
        %440 = vmatpush1.msra.mxu0 0.0
        %441 = vmatprep.subr.mxu0 0.0
        %442 = vmatpush1.msra.mxu0 0.0
        %443 = vmatprep.subr.mxu0 0.0
        %444 = vmatpush1.msra.mxu0 0.0
        %445 = vmatprep.subr.mxu0 0.0
        %446 = vmatpush1.msra.mxu0 0.0
        %447 = vmatprep.subr.mxu0 0.0
        %448 = vmatpush1.msra.mxu0 0.0
        %449 = vmatprep.subr.mxu0 0.0
        %450 = vmatpush1.msra.mxu0 0.0
        %451 = vmatprep.subr.mxu0 0.0
        %452 = vmatpush1.msra.mxu0 0.0
        %453 = vmatprep.subr.mxu0 0.0
        %454 = vmatpush1.msra.mxu0 0.0
        %455 = vmatprep.subr.mxu0 0.0
        %456 = vmatpush1.msra.mxu0 0.0
        %457 = vmatprep.subr.mxu0 0.0
        %458 = vmatpush1.msra.mxu0 0.0
        %459 = vmatprep.subr.mxu0 0.0
        %460 = vmatpush1.msra.mxu0 0.0
        %461 = vmatprep.subr.mxu0 0.0
        %462 = vmatpush1.msra.mxu0 0.0
        %463 = vmatprep.subr.mxu0 0.0
        %464 = vmatpush1.msra.mxu0 0.0
        %465 = vmatprep.subr.mxu0 0.0
        %466 = vmatpush1.msra.mxu0 0.0
        %467 = vmatprep.subr.mxu0 0.0
        %468 = vmatpush1.msra.mxu0 0.0
        %469 = vmatprep.subr.mxu0 0.0
        %470 = vmatpush1.msra.mxu0 0.0
        %471 = vmatprep.subr.mxu0 0.0
        %472 = vmatpush1.msra.mxu0 0.0
        %473 = vmatprep.mubr.f32.mxu0 0.0
        %474 = vmatmul.mubr.f32.gmra.mrb[0].mxu0 %v386
        %v475 = vpop.f32.mrb[0].mxu0
        %v476 = vadd.f32 %v347, %v475
        %v477 = vpop.f32.mrb[0].mxu0
        %478 = vmatprep.mubr.f32.mxu0 0.0
        %479 = vmatmul.mubr.f32.gmra.mrb[0].mxu0 %v389
        %v480 = vpop.f32.mrb[0].mxu0
        %v481 = vadd.f32 %v352, %v480
        %v482 = vpop.f32.mrb[0].mxu0
        %483 = vmatprep.mubr.f32.mxu0 0.0
        %484 = vmatmul.mubr.f32.gmra.mrb[0].mxu0 %v392
        %v485 = vpop.f32.mrb[0].mxu0
        %v486 = vadd.f32 %v357, %v485
        %v487 = vpop.f32.mrb[0].mxu0
        %488 = vmatprep.mubr.f32.mxu0 0.0
        %489 = vmatmul.mubr.f32.gmra.mrb[0].mxu0 %v395
        %v490 = vpop.f32.mrb[0].mxu0
        %v491 = vadd.f32 %v362, %v490
        %v492 = vpop.f32.mrb[0].mxu0
        %493 = vmatprep.mubr.f32.mxu0 0.0
        %494 = vmatmul.mubr.f32.gmra.mrb[0].mxu0 %v398
        %v495 = vpop.f32.mrb[0].mxu0
        %v496 = vadd.f32 %v367, %v495
        %v497 = vpop.f32.mrb[0].mxu0
        %498 = vmatprep.mubr.f32.mxu0 0.0
        %499 = vmatmul.mubr.f32.gmra.mrb[0].mxu0 %v401
        %v500 = vpop.f32.mrb[0].mxu0
        %v501 = vadd.f32 %v372, %v500
        %v502 = vpop.f32.mrb[0].mxu0
        %503 = vmatprep.mubr.f32.mxu0 0.0
        %504 = vmatmul.mubr.f32.gmra.mrb[0].mxu0 %v404
        %v505 = vpop.f32.mrb[0].mxu0
        %v506 = vadd.f32 %v377, %v505
        %v507 = vpop.f32.mrb[0].mxu0
        %508 = vmatprep.mubr.f32.mxu0 0.0
        %509 = vmatmul.mubr.f32.gmra.mrb[0].mxu0 %v407
        %v510 = vpop.f32.mrb[0].mxu0
        %v511 = vadd.f32 %v382, %v510
        %v512 = vpop.f32.mrb[0].mxu0
        %513 = vdwg.mxu0
        %v514 = vmax.f32 %v476, 0.0
        %v515 = vmax.f32 %v481, 0.0
        %v516 = vmax.f32 %v486, 0.0
        %v517 = vmax.f32 %v491, 0.0
        %v518 = vmax.f32 %v496, 0.0
        %v519 = vmax.f32 %v501, 0.0
        %v520 = vmax.f32 %v506, 0.0
        %v521 = vmax.f32 %v511, 0.0
        %v522 = vld [vmem:[%s3] sm:$0xff]
        %v523 = vld [vmem:[%s3 + $0x8] sm:$0xff]
        %v524 = vld [vmem:[%s3 + $0x10] sm:$0xff]
        %v525 = vld [vmem:[%s3 + $0x18] sm:$0xff]
        %v526 = vld [vmem:[%s3 + $0x20] sm:$0xff]
        %v527 = vld [vmem:[%s3 + $0x28] sm:$0xff]
        %v528 = vld [vmem:[%s3 + $0x30] sm:$0xff]
        %v529 = vld [vmem:[%s3 + $0x38] sm:$0xff]
        %v530 = vld [vmem:[%s4] sm:$0xff]
        %v531 = vld [vmem:[%s4 + $0x8] sm:$0xff]
        %v532 = vld [vmem:[%s4 + $0x10] sm:$0xff]
        %v533 = vld [vmem:[%s4 + $0x18] sm:$0xff]
        %v534 = vld [vmem:[%s4 + $0x20] sm:$0xff]
        %v535 = vld [vmem:[%s4 + $0x28] sm:$0xff]
        %v536 = vld [vmem:[%s4 + $0x30] sm:$0xff]
        %v537 = vld [vmem:[%s4 + $0x38] sm:$0xff]
        %539 = vset.pattern.permute.xlu0 0
        %540 = vperm.xlu0 %539, %v530
        %v541 = vpop.permute.xlu0 %540
        %544 = vset.pattern.permute.xlu0 0
        %545 = vperm.xlu0 %544, %v531
        %v546 = vpop.permute.xlu0 %545
        %549 = vset.pattern.permute.xlu0 0
        %550 = vperm.xlu0 %549, %v532
        %v551 = vpop.permute.xlu0 %550
        %554 = vset.pattern.permute.xlu0 0
        %555 = vperm.xlu0 %554, %v533
        %v556 = vpop.permute.xlu0 %555
        %559 = vset.pattern.permute.xlu0 0
        %560 = vperm.xlu0 %559, %v534
        %v561 = vpop.permute.xlu0 %560
        %564 = vset.pattern.permute.xlu0 0
        %565 = vperm.xlu0 %564, %v535
        %v566 = vpop.permute.xlu0 %565
        %569 = vset.pattern.permute.xlu0 0
        %570 = vperm.xlu0 %569, %v536
        %v571 = vpop.permute.xlu0 %570
        %574 = vset.pattern.permute.xlu0 0
        %575 = vperm.xlu0 %574, %v537
        %v576 = vpop.permute.xlu0 %575
        %vm578 = vcmask 523264
        %v580 = vsel %vm578, %v522, 0
        %v583 = vsel %vm578, %v523, 0
        %v586 = vsel %vm578, %v524, 0
        %v589 = vsel %vm578, %v525, 0
        %v592 = vsel %vm578, %v526, 0
        %v595 = vsel %vm578, %v527, 0
        %v598 = vsel %vm578, %v528, 0
        %v601 = vsel %vm578, %v529, 0
        %603 = vmatprep.subr.mxu0 0.0
        %604 = vmatpush1.msra.mxu0 %v514
        %605 = vmatprep.subr.mxu0 0.0
        %606 = vmatpush1.msra.mxu0 %v515
        %607 = vmatprep.subr.mxu0 0.0
        %608 = vmatpush1.msra.mxu0 %v516
        %609 = vmatprep.subr.mxu0 0.0
        %610 = vmatpush1.msra.mxu0 %v517
        %611 = vmatprep.subr.mxu0 0.0
        %612 = vmatpush1.msra.mxu0 %v518
        %613 = vmatprep.subr.mxu0 0.0
        %614 = vmatpush1.msra.mxu0 %v519
        %615 = vmatprep.subr.mxu0 0.0
        %616 = vmatpush1.msra.mxu0 %v520
        %617 = vmatprep.subr.mxu0 0.0
        %618 = vmatpush1.msra.mxu0 %v521
        %619 = vmatprep.subr.mxu0 0.0
        %620 = vmatpush1.msra.mxu0 0.0
        %621 = vmatprep.subr.mxu0 0.0
        %622 = vmatpush1.msra.mxu0 0.0
        %623 = vmatprep.subr.mxu0 0.0
        %624 = vmatpush1.msra.mxu0 0.0
        %625 = vmatprep.subr.mxu0 0.0
        %626 = vmatpush1.msra.mxu0 0.0
        %627 = vmatprep.subr.mxu0 0.0
        %628 = vmatpush1.msra.mxu0 0.0
        %629 = vmatprep.subr.mxu0 0.0
        %630 = vmatpush1.msra.mxu0 0.0
        %631 = vmatprep.subr.mxu0 0.0
        %632 = vmatpush1.msra.mxu0 0.0
        %633 = vmatprep.subr.mxu0 0.0
        %634 = vmatpush1.msra.mxu0 0.0
        %635 = vmatprep.subr.mxu0 0.0
        %636 = vmatpush1.msra.mxu0 0.0
        %637 = vmatprep.subr.mxu0 0.0
        %638 = vmatpush1.msra.mxu0 0.0
        %639 = vmatprep.subr.mxu0 0.0
        %640 = vmatpush1.msra.mxu0 0.0
        %641 = vmatprep.subr.mxu0 0.0
        %642 = vmatpush1.msra.mxu0 0.0
        %643 = vmatprep.subr.mxu0 0.0
        %644 = vmatpush1.msra.mxu0 0.0
        %645 = vmatprep.subr.mxu0 0.0
        %646 = vmatpush1.msra.mxu0 0.0
        %647 = vmatprep.subr.mxu0 0.0
        %648 = vmatpush1.msra.mxu0 0.0
        %649 = vmatprep.subr.mxu0 0.0
        %650 = vmatpush1.msra.mxu0 0.0
        %651 = vmatprep.subr.mxu0 0.0
        %652 = vmatpush1.msra.mxu0 0.0
        %653 = vmatprep.subr.mxu0 0.0
        %654 = vmatpush1.msra.mxu0 0.0
        %655 = vmatprep.subr.mxu0 0.0
        %656 = vmatpush1.msra.mxu0 0.0
        %657 = vmatprep.subr.mxu0 0.0
        %658 = vmatpush1.msra.mxu0 0.0
        %659 = vmatprep.subr.mxu0 0.0
        %660 = vmatpush1.msra.mxu0 0.0
        %661 = vmatprep.subr.mxu0 0.0
        %662 = vmatpush1.msra.mxu0 0.0
        %663 = vmatprep.subr.mxu0 0.0
        %664 = vmatpush1.msra.mxu0 0.0
        %665 = vmatprep.subr.mxu0 0.0
        %666 = vmatpush1.msra.mxu0 0.0
        %667 = vmatprep.mubr.f32.mxu0 0.0
        %668 = vmatmul.mubr.f32.gmra.mrb[0].mxu0 %v580
        %v669 = vpop.f32.mrb[0].mxu0
        %v670 = vadd.f32 %v541, %v669
        %v671 = vpop.f32.mrb[0].mxu0
        %672 = vmatprep.mubr.f32.mxu0 0.0
        %673 = vmatmul.mubr.f32.gmra.mrb[0].mxu0 %v583
        %v674 = vpop.f32.mrb[0].mxu0
        %v675 = vadd.f32 %v546, %v674
        %v676 = vpop.f32.mrb[0].mxu0
        %677 = vmatprep.mubr.f32.mxu0 0.0
        %678 = vmatmul.mubr.f32.gmra.mrb[0].mxu0 %v586
        %v679 = vpop.f32.mrb[0].mxu0
        %v680 = vadd.f32 %v551, %v679
        %v681 = vpop.f32.mrb[0].mxu0
        %682 = vmatprep.mubr.f32.mxu0 0.0
        %683 = vmatmul.mubr.f32.gmra.mrb[0].mxu0 %v589
        %v684 = vpop.f32.mrb[0].mxu0
        %v685 = vadd.f32 %v556, %v684
        %v686 = vpop.f32.mrb[0].mxu0
        %687 = vmatprep.mubr.f32.mxu0 0.0
        %688 = vmatmul.mubr.f32.gmra.mrb[0].mxu0 %v592
        %v689 = vpop.f32.mrb[0].mxu0
        %v690 = vadd.f32 %v561, %v689
        %v691 = vpop.f32.mrb[0].mxu0
        %692 = vmatprep.mubr.f32.mxu0 0.0
        %693 = vmatmul.mubr.f32.gmra.mrb[0].mxu0 %v595
        %v694 = vpop.f32.mrb[0].mxu0
        %v695 = vadd.f32 %v566, %v694
        %v696 = vpop.f32.mrb[0].mxu0
        %697 = vmatprep.mubr.f32.mxu0 0.0
        %698 = vmatmul.mubr.f32.gmra.mrb[0].mxu0 %v598
        %v699 = vpop.f32.mrb[0].mxu0
        %v700 = vadd.f32 %v571, %v699
        %v701 = vpop.f32.mrb[0].mxu0
        %702 = vmatprep.mubr.f32.mxu0 0.0
        %703 = vmatmul.mubr.f32.gmra.mrb[0].mxu0 %v601
        %v704 = vpop.f32.mrb[0].mxu0
        %v705 = vadd.f32 %v576, %v704
        %v706 = vpop.f32.mrb[0].mxu0
        %707 = vdwg.mxu0
        %v708 = vmax.f32 %v670, 0.0
        %v709 = vmax.f32 %v675, 0.0
        %v710 = vmax.f32 %v680, 0.0
        %v711 = vmax.f32 %v685, 0.0
        %v712 = vmax.f32 %v690, 0.0
        %v713 = vmax.f32 %v695, 0.0
        %v714 = vmax.f32 %v700, 0.0
        %v715 = vmax.f32 %v705, 0.0
        %v716 = vld [vmem:[%s5] sm:$0xff]
        %v717 = vld [vmem:[%s5 + $0x8] sm:$0xff]
        %v718 = vld [vmem:[%s5 + $0x10] sm:$0xff]
        %v719 = vld [vmem:[%s5 + $0x18] sm:$0xff]
        %v720 = vld [vmem:[%s5 + $0x20] sm:$0xff]
        %v721 = vld [vmem:[%s5 + $0x28] sm:$0xff]
        %v722 = vld [vmem:[%s5 + $0x30] sm:$0xff]
        %v723 = vld [vmem:[%s5 + $0x38] sm:$0xff]
        %725 = vset.pattern.permute.xlu0 0
        %726 = vperm.xlu0 %725, %v716
        %v727 = vpop.permute.xlu0 %726
        %730 = vset.pattern.permute.xlu0 0
        %731 = vperm.xlu0 %730, %v717
        %v732 = vpop.permute.xlu0 %731
        %735 = vset.pattern.permute.xlu0 0
        %736 = vperm.xlu0 %735, %v718
        %v737 = vpop.permute.xlu0 %736
        %740 = vset.pattern.permute.xlu0 0
        %741 = vperm.xlu0 %740, %v719
        %v742 = vpop.permute.xlu0 %741
        %745 = vset.pattern.permute.xlu0 0
        %746 = vperm.xlu0 %745, %v720
        %v747 = vpop.permute.xlu0 %746
        %750 = vset.pattern.permute.xlu0 0
        %751 = vperm.xlu0 %750, %v721
        %v752 = vpop.permute.xlu0 %751
        %755 = vset.pattern.permute.xlu0 0
        %756 = vperm.xlu0 %755, %v722
        %v757 = vpop.permute.xlu0 %756
        %760 = vset.pattern.permute.xlu0 0
        %761 = vperm.xlu0 %760, %v723
        %v762 = vpop.permute.xlu0 %761
        %v764 = vmul.f32 %v708, %v727
        %v765 = vmul.f32 %v709, %v732
        %v766 = vmul.f32 %v710, %v737
        %v767 = vmul.f32 %v711, %v742
        %v768 = vmul.f32 %v712, %v747
        %v769 = vmul.f32 %v713, %v752
        %v770 = vmul.f32 %v714, %v757
        %v771 = vmul.f32 %v715, %v762
        %v772 = vadd.f32 %v764, %v765
        %v773 = vadd.f32 %v772, %v766
        %v774 = vadd.f32 %v773, %v767
        %v775 = vadd.f32 %v774, %v768
        %v776 = vadd.f32 %v775, %v769
        %v777 = vadd.f32 %v776, %v770
        %v778 = vadd.f32 %v777, %v771
        %v779 = vrot.slane %v778, 4
        %v780 = vadd.f32 %v778, %v779
        %v781 = vrot.slane %v780, 2
        %v782 = vadd.f32 %v780, %v781
        %v783 = vrot.slane %v782, 1
        %v784 = vadd.f32 %v782, %v783
        %v785 = vld [vmem:[#allocation2] sm:$0x1]
        %787 = vset.pattern.permute.xlu0 0
        %788 = vperm.xlu0 %787, %v785
        %v789 = vpop.permute.xlu0 %788
        %v791 = vlaneseq
        %v792 = vshrl.u32 %v791, 7
        %v793 = vsub.s32 0, %v792
        %v794 = vrot.slane %v789, %v793
        %v795 = vadd.f32 %v784, %v794
        %796 = vst [vmem:[%s323] sm:$0x1] %v795
        %s797 = sand.u32 %s183, 1
        %s798 = scalar_lea.sflag [#allocation5], %s797
        %s799 = sand.u32 %s183, 1
        %s800 = scalar_lea.vmem [#allocation4], %s799
        // Predicated region
        $region87: #{tpu_custom_call.1} parent=81 // pred_check
          %p801 = pneg %p193
        $region88: #{tpu_custom_call.1} parent=81 // pred_check_branch
          %803 = sbr.rel (%p801) target = $region90
        $region89: #{tpu_custom_call.1} parent=81 // pred_region
          %s805 = ssub.s32 16, 16
          %806 = vsyncadd %s798, %s805
          %s807 = smul.addr %s23, 16
          %s808 = scalar_lea.hbm %s7, %s807
          %s810 = sshll.u32 %s800, 4
          %s811 = int_to_ptr.vmem [resolvable:$true] %s810
          %813 = dma.vmem_to_hbm [thread:$0]  %s811, 16, %s808, %s798
        $region90: #{tpu_custom_call.1} parent=81 // pred_fallthru
          _
      $region82: #{tpu_custom_call.1} parent=5 // pred_fallthru
        _
      %p814 = scmp.le.s32.totalorder 2, %s18
      // Predicated region
      $region91: #{tpu_custom_call.1} parent=5 // pred_check
        %p815 = pneg %p814
      $region92: #{tpu_custom_call.1} parent=5 // pred_check_branch
        %817 = sbr.rel (%p815) target = $region94
      $region93: #{tpu_custom_call.1} parent=5 // pred_region
        %s818 = ssub.s32 %s18, 2
        // Predicated region
        $region95: #{tpu_custom_call.1} parent=93 // pred_check
          %p819 = pneg %p199
        $region96: #{tpu_custom_call.1} parent=93 // pred_check_branch
          %821 = sbr.rel (%p819) target = $region98
        $region97: #{tpu_custom_call.1} parent=93 // pred_region
          %s822 = sand.u32 %s184, 1
          %s823 = scalar_lea.sflag [#allocation5], %s822
          %s824 = sand.u32 %s184, 1
          %s825 = scalar_lea.vmem [#allocation4], %s824
          %826 = dma.done %s823, 16
        $region98: #{tpu_custom_call.1} parent=93 // pred_fallthru
          _
      $region94: #{tpu_custom_call.1} parent=5 // pred_fallthru
        _
    $region6: #{tpu_custom_call.1} parent=1 // loop_footer
      %s22 = sadd.s32 1, %s18
    $region7: #{tpu_custom_call.1} parent=1 // loop_footer_branch
      %17 = sbr.rel target = $region3
    $region8: #{tpu_custom_call.1} parent=1 // loop_exit
      _
    %827 = vsyncpa [#allocation5], 1
    %s828 = scalar_lea.sflag [#allocation5], 1
    %829 = vsyncpa %s828, 1

</llo_original>
